<compile_context>
chip_gen: v6e
topology: v6e:2x2x1
jax: 0.10.0
libtpu: 0.0.40
codegen_flags: <defaults>
</compile_context>

<pallas_src>
import jax
import jax.numpy as jnp
from jax.experimental import pallas as pl
from jax.experimental.pallas import tpu as pltpu


def _sgcd_kernel(u_ref, v_ref, d_ref):
    """Per-row chord length ||u/||u|| - v/||v|| ||_2, written lane-dense.

    u_ref, v_ref : (tb, F) tiles in VMEM
    d_ref        : (1, 1, tb) lane-dense row of per-row chord lengths
    """
    u = u_ref[...].astype(jnp.float32)
    v = v_ref[...].astype(jnp.float32)

    # 1/||u||, 1/||v||: rsqrt lands on the EUP slot; rsqrt*mul instead of
    # sqrt+divide keeps the per-element work at a single vmul.
    # TODO(synk): on v7x the three row reductions could be offloaded to the
    # idle MXU ((tb,F) @ (F,1) ones column, precision=HIGHEST) to relieve
    # VALU pressure at 3.2 TB/s; kept on VPU/XLU here for f32-exact sums.
    inv_u = jax.lax.rsqrt(jnp.sum(u * u, axis=-1, keepdims=True))
    inv_v = jax.lax.rsqrt(jnp.sum(v * v, axis=-1, keepdims=True))

    # Diff-based chord (not 2 - 2*cos) for accuracy when u ~= v.
    diff = u * inv_u - v * inv_v
    d_col = jnp.sqrt(jnp.sum(diff * diff, axis=-1, keepdims=True))  # (tb, 1)

    # Sublane->lane transpose (XLU) so the store is a full-width vst.
    d_ref[0] = jnp.transpose(d_col, (1, 0))                         # (1, tb)


def _chip_params():
    """(tensorcores_per_chip, vmem_tile_budget_bytes, vmem_limit_bytes)."""
    try:
        kind = jax.devices()[0].device_kind.lower()
    except Exception:
        kind = ""
    if "v7" in kind:
        # 2 TCs/chip; 64 MiB physical VMEM per TC (32 MiB scoped default).
        return 2, 28 << 20, 44 << 20
    # v5e / v6e: 1 TC, 128 MiB physical VMEM.
    return 1, 40 << 20, 64 << 20


def _choose_tb(B, F, itemsize, num_cores, budget):
    """Largest batch tile whose double-buffered inputs + f32 temps fit budget."""
    # 2 inputs x 2 pipeline buffers at the input itemsize, plus ~3 live f32
    # temporaries (u, v upcasts and diff) kept in VMEM across the reduction.
    bytes_per_row = (2 * 2 * itemsize + 3 * 4) * F
    align = 16 if itemsize < 4 else 8
    cap = max(align, (budget // bytes_per_row) // align * align)
    cap = min(cap, 2048)          # per-step overhead is fully amortized by here

    # v7x: guarantee both TensorCores get grid steps (and an even step count);
    # single-TC v5e/v6e: 1 step with the biggest tile is optimal.
    min_steps = num_cores if B >= num_cores * align else 1
    steps = max(min_steps, pl.cdiv(B, cap))
    if num_cores > 1 and steps % num_cores:
        steps += num_cores - steps % num_cores
    tb = pl.cdiv(B, steps)
    tb = min(cap, ((tb + align - 1) // align) * align, B)
    return max(tb, 1)


def _row_distances(u, v):
    """Per-row chord distance between the L2-normalized rows, shape (B,) f32."""
    B, F = u.shape
    assert v.shape == (B, F)
    num_cores, budget, vmem_limit = _chip_params()
    itemsize = jnp.dtype(u.dtype).itemsize
    tb = _choose_tb(B, F, itemsize, num_cores, budget)
    grid = (pl.cdiv(B, tb),)

    # TODO(synk): for very large F (when tb degenerates toward the 8/16-row
    # floor), add an "arbitrary" F-chunk grid axis with per-row partial-sum
    # accumulators instead of shrinking the batch tile.
    out = pl.pallas_call(
        _sgcd_kernel,
        out_shape=jax.ShapeDtypeStruct((grid[0], 1, tb), jnp.float32),
        grid_spec=pltpu.PrefetchScalarGridSpec(
            num_scalar_prefetch=0,
            grid=grid,
            in_specs=[
                pl.BlockSpec((tb, F), lambda i: (i, 0)),
                pl.BlockSpec((tb, F), lambda i: (i, 0)),
            ],
            out_specs=pl.BlockSpec((1, 1, tb), lambda i: (i, 0, 0)),
        ),
        compiler_params=pltpu.CompilerParams(
            dimension_semantics=("parallel",),
            vmem_limit_bytes=vmem_limit,
        ),
    )(u, v)
    # Lane-dense (num_tiles, 1, tb) slab -> per-row vector; any padded tail
    # rows of the last tile are dropped here before the epilogue.
    return out.reshape(-1)[:B]


def squared_great_circle_distance_loss(u, v):
    """Matches SquaredGreatCircleDistanceLoss.forward for (B, F) inputs."""
    d = _row_distances(u, v)                              # (B,)
    # O(B) epilogue in plain JAX (arcsin has no Mosaic lowering).  Clamp d/2
    # at 1.0 to guard against f32 rounding pushing it above 1 when u ~ -v.
    half = jnp.minimum(d * 0.5, 1.0)
    return jnp.mean(2.0 * jnp.square(jnp.arcsin(half)))


def _reference(u, v):
    u_n = u / jnp.linalg.norm(u, axis=-1, keepdims=True)
    v_n = v / jnp.linalg.norm(v, axis=-1, keepdims=True)
    d = jnp.linalg.norm(u_n - v_n, axis=-1)
    return jnp.mean(2.0 * jnp.square(jnp.arcsin(d / 2.0)))


if __name__ == "__main__":
    key = jax.random.PRNGKey(0)
    ku, kv = jax.random.split(key)

    B, F = 8, 128  # (batch_size, num_features) smoke-test shape
    u = jax.random.normal(ku, (B, F), dtype=jnp.float32)
    v = jax.random.normal(kv, (B, F), dtype=jnp.float32)

    loss = jax.jit(squared_great_circle_distance_loss)(u, v)
    loss = jax.block_until_ready(loss)

    ref = _reference(u, v)
    assert jnp.allclose(loss, ref, rtol=1e-5, atol=1e-5), (loss, ref)

    print("KERNEL_OK")
</pallas_src>

<mosaic_0001>
module attributes {stable_mosaic.version = 11 : i64} {
  func.func @_sgcd_kernel(%arg0: i32, %arg1: memref<8x128xf32, #tpu.memory_space<vmem>>, %arg2: memref<8x128xf32, #tpu.memory_space<vmem>>, %arg3: memref<1x1x8xf32, #tpu.memory_space<vmem>>) attributes {dimension_semantics = [#tpu.dimension_semantics<parallel>], iteration_bounds = array<i64: 1>, scalar_prefetch = 0 : i64, scratch_operands = 0 : i64, tpu.core_type = #tpu.core_type<tc>, window_params = [{transform_indices = @transform_0, window_bounds = array<i64: 8, 128>}, {transform_indices = @transform_1, window_bounds = array<i64: 8, 128>}, {transform_indices = @transform_2, window_bounds = array<i64: 1, 1, 8>}]} {
    %c0 = arith.constant 0 : index
    %c0_0 = arith.constant 0 : index
    %0 = vector.load %arg1[%c0, %c0_0] : memref<8x128xf32, #tpu.memory_space<vmem>>, vector<8x128xf32>
    %c0_1 = arith.constant 0 : index
    %c0_2 = arith.constant 0 : index
    %1 = vector.load %arg2[%c0_1, %c0_2] : memref<8x128xf32, #tpu.memory_space<vmem>>, vector<8x128xf32>
    %2 = arith.mulf %0, %0 : vector<8x128xf32>
    %cst = arith.constant dense<0.000000e+00> : vector<8xf32>
    %3 = vector.multi_reduction <add>, %2, %cst [1] : vector<8x128xf32> to vector<8xf32>
    %4 = vector.shape_cast %3 : vector<8xf32> to vector<8x1xf32>
    %5 = math.rsqrt %4 : vector<8x1xf32>
    %6 = arith.mulf %1, %1 : vector<8x128xf32>
    %cst_3 = arith.constant dense<0.000000e+00> : vector<8xf32>
    %7 = vector.multi_reduction <add>, %6, %cst_3 [1] : vector<8x128xf32> to vector<8xf32>
    %8 = vector.shape_cast %7 : vector<8xf32> to vector<8x1xf32>
    %9 = math.rsqrt %8 : vector<8x1xf32>
    %10 = vector.broadcast %5 : vector<8x1xf32> to vector<8x128xf32>
    %11 = arith.mulf %0, %10 : vector<8x128xf32>
    %12 = vector.broadcast %9 : vector<8x1xf32> to vector<8x128xf32>
    %13 = arith.mulf %1, %12 : vector<8x128xf32>
    %14 = arith.subf %11, %13 : vector<8x128xf32>
    %15 = arith.mulf %14, %14 : vector<8x128xf32>
    %cst_4 = arith.constant dense<0.000000e+00> : vector<8xf32>
    %16 = vector.multi_reduction <add>, %15, %cst_4 [1] : vector<8x128xf32> to vector<8xf32>
    %17 = vector.shape_cast %16 : vector<8xf32> to vector<8x1xf32>
    %18 = math.sqrt %17 : vector<8x1xf32>
    %19 = tpu.transpose %18, [1, 0] : vector<8x1xf32> -> vector<1x8xf32>
    %c0_5 = arith.constant 0 : index
    %c0_6 = arith.constant 0 : index
    %c0_7 = arith.constant 0 : index
    %20 = vector.load %arg3[%c0_5, %c0_6, %c0_7] : memref<1x1x8xf32, #tpu.memory_space<vmem>>, vector<1x1x8xf32>
    %21 = vector.shape_cast %20 : vector<1x1x8xf32> to vector<1x8xf32>
    %22 = vector.shape_cast %19 : vector<1x8xf32> to vector<1x1x8xf32>
    tpu.vector_store %arg3[%c0_5, %c0_6, %c0_7], %22 {strides = array<i32>} : memref<1x1x8xf32, #tpu.memory_space<vmem>>, vector<1x1x8xf32>,
    return
  }
  func.func @transform_0(%arg0: i32) -> (i32, i32) {
    %c0_i32 = arith.constant 0 : i32
    %c0_i32_0 = arith.constant 0 : i32
    return %arg0, %c0_i32 : i32, i32
  }
  func.func @transform_1(%arg0: i32) -> (i32, i32) {
    %c0_i32 = arith.constant 0 : i32
    %c0_i32_0 = arith.constant 0 : i32
    return %arg0, %c0_i32 : i32, i32
  }
  func.func @transform_2(%arg0: i32) -> (i32, i32, i32) {
    %c0_i32 = arith.constant 0 : i32
    %c0_i32_0 = arith.constant 0 : i32
    %c0_i32_1 = arith.constant 0 : i32
    return %arg0, %c0_i32, %c0_i32_0 : i32, i32, i32
  }
}

</mosaic_0001>

<llo_original>
// kernel: squared_great_circle_distance_loss.1
$region0: #{squared_great_circle_distance_loss.1}
  #allocation0 [shape = 'u32[]', space=smem, size = 0x4, offset = 0x4, fixed_abs, tag = 'smem constant byte address 0x4 - core index']
  #allocation1 [shape = 'u32[144,128]{1,0:T(1,128)}', space=vmem, size = 0x12000, scoped, tag = 'internal scratch']
  %s0 = inlined_call_operand.hbm [shape: f32[8,128], index: 0, kind: input, shape index: {}]
  %s1 = inlined_call_operand.hbm [shape: f32[8,128], index: 1, kind: input, shape index: {}]
  %s2 = inlined_call_operand.vmem [shape: f32[1,1,8], index: 2, kind: output, shape index: {}]
  %s3 = sld [smem:[#allocation0]]
  $region26: #{squared_great_circle_distance_loss.1} parent=0
    _
  %s5 = ssub.s32 1, %s3
  %s6 = scalar_select 0, %s5, %s3
  $region1: #{squared_great_circle_distance_loss.1} parent=0
    #allocation2 [shape = 'u8[4096]{0}', space=vmem, size = 0x1000, scoped, tag = 'input window, operand 0, single buffered']
    #allocation3 [shape = 's32[1]{0}', space=sflag, size = 0x4, scoped, tag = 'scoped memory for squared_great_circle_distance_loss.1']
    #allocation4 [shape = 'u8[4096]{0}', space=vmem, size = 0x1000, scoped, tag = 'input window, operand 1, single buffered']
    #allocation5 [shape = 's32[1]{0}', space=sflag, size = 0x4, scoped, tag = 'scoped memory for squared_great_circle_distance_loss.1']
    %7 = vsyncpa [#allocation3], 0
    %8 = vsyncpa [#allocation5], 0
    // Predicated region
    $region2: #{squared_great_circle_distance_loss.1} parent=1 // pred_check
      _
    $region3: #{squared_great_circle_distance_loss.1} parent=1 // pred_check_branch
      %10 = sbr.rel (0) target = $region5
    $region4: #{squared_great_circle_distance_loss.1} parent=1 // pred_region
      %s12 = ssub.s32 128, 128
      %13 = vsyncadd [#allocation3], %s12
      %s15 = sshll.u32 [#allocation2], 4
      %s16 = int_to_ptr.vmem [resolvable:$true] %s15
      %18 = dma.hbm_to_vmem [thread:$0]  %s0, 128, %s16, [#allocation3]
    $region5: #{squared_great_circle_distance_loss.1} parent=1 // pred_fallthru
      _
    // Predicated region
    $region6: #{squared_great_circle_distance_loss.1} parent=1 // pred_check
      _
    $region7: #{squared_great_circle_distance_loss.1} parent=1 // pred_check_branch
      %20 = sbr.rel (0) target = $region9
    $region8: #{squared_great_circle_distance_loss.1} parent=1 // pred_region
      %s22 = ssub.s32 128, 128
      %23 = vsyncadd [#allocation5], %s22
      %s25 = sshll.u32 [#allocation4], 4
      %s26 = int_to_ptr.vmem [resolvable:$true] %s25
      %28 = dma.hbm_to_vmem [thread:$0]  %s1, 128, %s26, [#allocation5]
    $region9: #{squared_great_circle_distance_loss.1} parent=1 // pred_fallthru
      _
    // Predicated region
    $region10: #{squared_great_circle_distance_loss.1} parent=1 // pred_check
      _
    $region11: #{squared_great_circle_distance_loss.1} parent=1 // pred_check_branch
      %30 = sbr.rel (0) target = $region13
    $region12: #{squared_great_circle_distance_loss.1} parent=1 // pred_region
      %31 = dma.done [#allocation3], 128
    $region13: #{squared_great_circle_distance_loss.1} parent=1 // pred_fallthru
      _
    // Predicated region
    $region14: #{squared_great_circle_distance_loss.1} parent=1 // pred_check
      _
    $region15: #{squared_great_circle_distance_loss.1} parent=1 // pred_check_branch
      %33 = sbr.rel (0) target = $region17
    $region16: #{squared_great_circle_distance_loss.1} parent=1 // pred_region
      %34 = dma.done [#allocation5], 128
    $region17: #{squared_great_circle_distance_loss.1} parent=1 // pred_fallthru
      _
    %v35 = vld [vmem:[#allocation2] sm:$0xff]
    %v36 = vld [vmem:[#allocation4] sm:$0xff]
    %v37 = vmul.f32 %v35, %v35
    %38 = vadd.xlane.f32.xlu0 %v37
    %v39 = vpop.xlane.xlu0 %38
    %v40 = vrsqrt.pop %v39
    %v41 = vmul.f32 %v36, %v36
    %42 = vadd.xlane.f32.xlu0 %v41
    %v43 = vpop.xlane.xlu0 %42
    %v44 = vrsqrt.pop %v43
    %v45 = vmul.f32 %v35, %v40
    %v46 = vmul.f32 %v36, %v44
    %v47 = vsub.f32 %v45, %v46
    %v48 = vmul.f32 %v47, %v47
    %49 = vadd.xlane.f32.xlu0 %v48
    %v50 = vpop.xlane.xlu0 %49
    %v51 = vrsqrt.pop %v50
    %v52 = vmul.f32 %v50, %v51
    %vm53 = vcmp.eq.f32.partialorder %v50, inf
    %v54 = vsel %vm53, %v50, %v52
    %vm55 = vcmp.eq.f32.partialorder %v50, 0.0
    %v56 = vand.u32 %v50, 2147483648
    %v57 = vsel %vm55, %v56, %v54
    %58 = vxpose.xlu0.b32.start [1/16] %v57, 128
    %59 = vxpose.xlu0.b32.cont [2/16] 0.0, 128
    %60 = vxpose.xlu0.b32.cont [3/16] 0.0, 128
    %61 = vxpose.xlu0.b32.cont [4/16] 0.0, 128
    %62 = vxpose.xlu0.b32.cont [5/16] 0.0, 128
    %63 = vxpose.xlu0.b32.cont [6/16] 0.0, 128
    %64 = vxpose.xlu0.b32.cont [7/16] 0.0, 128
    %65 = vxpose.xlu0.b32.cont [8/16] 0.0, 128
    %66 = vxpose.xlu0.b32.cont [9/16] 0.0, 128
    %67 = vxpose.xlu0.b32.cont [10/16] 0.0, 128
    %68 = vxpose.xlu0.b32.cont [11/16] 0.0, 128
    %69 = vxpose.xlu0.b32.cont [12/16] 0.0, 128
    %70 = vxpose.xlu0.b32.cont [13/16] 0.0, 128
    %71 = vxpose.xlu0.b32.cont [14/16] 0.0, 128
    %72 = vxpose.xlu0.b32.cont [15/16] 0.0, 128
    %73 = vxpose.xlu0.b32.end [16/16] 0.0, 128
    %v74 = vpop.trf.xlu0
    %v75 = vpop.trf.xlu0
    %v76 = vpop.trf.xlu0
    %v77 = vpop.trf.xlu0
    %v78 = vpop.trf.xlu0
    %v79 = vpop.trf.xlu0
    %v80 = vpop.trf.xlu0
    %v81 = vpop.trf.xlu0
    %v82 = vpop.trf.xlu0
    %v83 = vpop.trf.xlu0
    %v84 = vpop.trf.xlu0
    %v85 = vpop.trf.xlu0
    %v86 = vpop.trf.xlu0
    %v87 = vpop.trf.xlu0
    %v88 = vpop.trf.xlu0
    %v89 = vpop.trf.xlu0
    %vm90 = vcmask 57344
    %91 = vst.msk [vmem:[%s2] sm:$0x1] %vm90, %v74
    // Predicated region
    $region18: #{squared_great_circle_distance_loss.1} parent=1 // pred_check
      _
    $region19: #{squared_great_circle_distance_loss.1} parent=1 // pred_check_branch
      %93 = sbr.rel (0) target = $region21
    $region20: #{squared_great_circle_distance_loss.1} parent=1 // pred_region
      _
    $region21: #{squared_great_circle_distance_loss.1} parent=1 // pred_fallthru
      _
    // Predicated region
    $region22: #{squared_great_circle_distance_loss.1} parent=1 // pred_check
      _
    $region23: #{squared_great_circle_distance_loss.1} parent=1 // pred_check_branch
      %95 = sbr.rel (0) target = $region25
    $region24: #{squared_great_circle_distance_loss.1} parent=1 // pred_region
      _
    $region25: #{squared_great_circle_distance_loss.1} parent=1 // pred_fallthru
      _
    %96 = vsyncpa [#allocation3], 1
    %97 = vsyncpa [#allocation5], 1

</llo_original>
